<compile_context>
chip_gen: v5e
topology: v5e:2x2
jax: 0.10.0
libtpu: 0.0.40
codegen_flags: <defaults>
</compile_context>

<pallas_src>
import math

import jax
import jax.numpy as jnp
from jax.experimental import pallas as pl
from jax.experimental.pallas import tpu as pltpu


# ----------------------------- kernels --------------------------------------


def ffn_resident_kernel(x_ref, w1_ref, b1_ref, w2_ref, b2_ref, o_ref):
    # x_ref:  (tm, dm_p)       x.dtype (cast to bf16 in-kernel)
    # w1_ref: (dm_p, dff_p)    bf16, resident (constant block index -> DMA'd once)
    # b1_ref: (1, dff_p)       f32
    # w2_ref: (dff_p, dm_p)    bf16, resident
    # b2_ref: (1, dm_p)        f32
    # o_ref:  (tm, dm_p)       x.dtype
    x = x_ref[...].astype(w1_ref.dtype)                    # in-kernel cast (VPU slack)
    h = jnp.dot(x, w1_ref[...], preferred_element_type=jnp.float32)
    h = jnp.maximum(h + b1_ref[...], 0.0)                  # bias + ReLU in f32
    # dropout == identity (inference)
    y = jnp.dot(h.astype(w2_ref.dtype), w2_ref[...],
                preferred_element_type=jnp.float32)
    o_ref[...] = (y + b2_ref[...]).astype(o_ref.dtype)


def ffn_tiled_kernel(x_ref, w1_ref, b1_ref, w2_ref, b2_ref, o_ref, acc_ref):
    # Fallback when the full weights do not fit in VMEM.
    # x_ref:  (tm, dm_p);  w1_ref: (dm_p, tf);  b1_ref: (1, tf)
    # w2_ref: (tf, dm_p);  b2_ref: (1, dm_p);   o_ref/acc_ref: (tm, dm_p)
    k = pl.program_id(1)

    @pl.when(k == 0)
    def _():
        acc_ref[...] = jnp.zeros_like(acc_ref)

    x = x_ref[...].astype(w1_ref.dtype)
    h = jnp.dot(x, w1_ref[...], preferred_element_type=jnp.float32)
    h = jnp.maximum(h + b1_ref[...], 0.0)                  # valid per-k: first GEMM's
    # dropout == identity (inference)                       # contraction (d_model) is never split
    acc_ref[...] += jnp.dot(h.astype(w2_ref.dtype), w2_ref[...],
                            preferred_element_type=jnp.float32)

    @pl.when(k == pl.num_programs(1) - 1)
    def _():
        o_ref[...] = (acc_ref[...] + b2_ref[...]).astype(o_ref.dtype)


# ----------------------------- helpers --------------------------------------


def _round_up(a, m):
    return ((a + m - 1) // m) * m


def _resident_vmem_bytes(tm, dm_p, dff_p, x_isz, o_isz):
    wb = 2 * dm_p * dff_p * 2 * 2        # W1^T + W2^T bf16 (conservative: 2 buffers each)
    xb = tm * dm_p * x_isz * 2
    ob = tm * dm_p * o_isz * 2
    hb = tm * dff_p * 4 * 2              # f32 intermediate (conservative: 2 live copies)
    bias = (dff_p + dm_p) * 4 * 2
    return wb + xb + ob + hb + bias


def _tiled_vmem_bytes(tm, tf, dm_p, dff_p, x_isz, o_isz):
    wb = 2 * dm_p * tf * 2 * 2
    xb = tm * dm_p * x_isz * 2
    ob = tm * dm_p * o_isz * 2
    acc = tm * dm_p * 4
    hb = tm * tf * 4 * 2
    bias = (dff_p + dm_p) * 4 * 2
    return wb + xb + ob + acc + hb + bias


def prepare_ffn_params(w1, b1, w2, b2, *, compute_dtype=jnp.bfloat16):
    """One-time parameter prep (call once at setup, NOT per forward).

    w1: [d_ff, d_model], b1: [d_ff], w2: [d_model, d_ff], b2: [d_model]
    (PyTorch nn.Linear layout).  Weights are transposed to K-major, cast to
    bf16 once, and zero-padded so d_model / d_ff are multiples of 128.
    """
    d_ff, d_model = w1.shape
    dm_p = _round_up(d_model, 128)
    dff_p = _round_up(d_ff, 128)

    w1t = jnp.zeros((dm_p, dff_p), compute_dtype)
    w1t = w1t.at[:d_model, :d_ff].set(w1.T.astype(compute_dtype))
    w2t = jnp.zeros((dff_p, dm_p), compute_dtype)
    w2t = w2t.at[:d_ff, :d_model].set(w2.T.astype(compute_dtype))
    b1p = jnp.zeros((1, dff_p), jnp.float32).at[0, :d_ff].set(b1.astype(jnp.float32))
    b2p = jnp.zeros((1, dm_p), jnp.float32).at[0, :d_model].set(b2.astype(jnp.float32))

    return dict(w1t=w1t, b1=b1p, w2t=w2t, b2=b2p,
                d_model=d_model, d_ff=d_ff, dm_p=dm_p, dff_p=dff_p)


# ----------------------------- forward --------------------------------------


def positionwise_feed_forward(x, params, *, tm=512, tf=1024, path="auto"):
    """x: [..., d_model] (any float dtype); params from prepare_ffn_params."""
    d_model = params["d_model"]
    dm_p, dff_p = params["dm_p"], params["dff_p"]
    w1t, b1p, w2t, b2p = params["w1t"], params["b1"], params["w2t"], params["b2"]
    assert x.shape[-1] == d_model

    lead_shape = x.shape[:-1]
    M = math.prod(lead_shape) if lead_shape else 1
    x2 = x.reshape(M, d_model)

    # Row tile: keep MXU-sized tiles, pad rows up instead of shrinking tm.
    tm = max(128, min(tm, _round_up(M, 128)))
    M_p = _round_up(M, tm)

    # d_ff tile for the fallback path: multiple of 128 that divides dff_p.
    tf = min(tf, dff_p)
    tf = max(128, (tf // 128) * 128)
    while dff_p % tf:
        tf -= 128

    if M_p != M or dm_p != d_model:
        x2 = jnp.pad(x2, ((0, M_p - M), (0, dm_p - d_model)))

    try:
        vmem_cap = int(pltpu.get_tpu_info().vmem_capacity_bytes)
    except Exception:
        vmem_cap = 64 << 20   # conservative (v7x physical)

    x_isz = jnp.dtype(x.dtype).itemsize
    o_isz = x_isz

    resident_need = _resident_vmem_bytes(tm, dm_p, dff_p, x_isz, o_isz)
    use_resident = (path == "resident") or (
        path == "auto" and resident_need <= int(0.55 * vmem_cap))

    if use_resident:
        need = resident_need
        grid = (M_p // tm,)
        kernel = ffn_resident_kernel
        in_specs = [
            pl.BlockSpec((tm, dm_p),    lambda i: (i, 0)),   # x rows
            pl.BlockSpec((dm_p, dff_p), lambda i: (0, 0)),   # full W1^T (resident)
            pl.BlockSpec((1, dff_p),    lambda i: (0, 0)),   # b1
            pl.BlockSpec((dff_p, dm_p), lambda i: (0, 0)),   # full W2^T (resident)
            pl.BlockSpec((1, dm_p),     lambda i: (0, 0)),   # b2
        ]
        out_specs = pl.BlockSpec((tm, dm_p), lambda i: (i, 0))
        scratch_shapes = []
        dim_sem = ("parallel",)
    else:
        need = _tiled_vmem_bytes(tm, tf, dm_p, dff_p, x_isz, o_isz)
        grid = (M_p // tm, dff_p // tf)
        kernel = ffn_tiled_kernel
        in_specs = [
            pl.BlockSpec((tm, dm_p),  lambda i, k: (i, 0)),   # x rows (re-used across k)
            pl.BlockSpec((dm_p, tf),  lambda i, k: (0, k)),   # W1^T slice (K-major)
            pl.BlockSpec((1, tf),     lambda i, k: (0, k)),   # b1 slice
            pl.BlockSpec((tf, dm_p),  lambda i, k: (k, 0)),   # W2^T slice (K-major)
            pl.BlockSpec((1, dm_p),   lambda i, k: (0, 0)),   # b2
        ]
        out_specs = pl.BlockSpec((tm, dm_p), lambda i, k: (i, 0))
        scratch_shapes = [pltpu.VMEM((tm, dm_p), jnp.float32)]
        dim_sem = ("parallel", "arbitrary")

    vmem_limit = int(min(max(need + (8 << 20), 32 << 20), int(0.75 * vmem_cap)))

    flops = 4 * M_p * dm_p * dff_p
    bytes_accessed = (M_p * dm_p * (x_isz + o_isz)        # activations in/out
                      + 2 * dm_p * dff_p * 2              # weights (bf16), once
                      + (dff_p + dm_p) * 4)               # biases
    cost = pl.CostEstimate(flops=flops, transcendentals=0,
                           bytes_accessed=bytes_accessed)

    out = pl.pallas_call(
        kernel,
        out_shape=jax.ShapeDtypeStruct((M_p, dm_p), x.dtype),
        grid_spec=pltpu.PrefetchScalarGridSpec(
            num_scalar_prefetch=0,
            grid=grid,
            in_specs=in_specs,
            out_specs=out_specs,
            scratch_shapes=scratch_shapes),
        compiler_params=pltpu.CompilerParams(
            dimension_semantics=dim_sem,
            vmem_limit_bytes=vmem_limit),
        cost_estimate=cost,
    )(x2, w1t, b1p, w2t, b2p)

    return out[:M, :d_model].reshape(*lead_shape, d_model)


# ----------------------------- test harness ---------------------------------


def _init_linear(key, out_features, in_features, dtype=jnp.float32):
    # nn.Linear default init: U(-1/sqrt(fan_in), +1/sqrt(fan_in))
    kw, kb = jax.random.split(key)
    bound = 1.0 / (in_features ** 0.5)
    w = jax.random.uniform(kw, (out_features, in_features), dtype,
                           minval=-bound, maxval=bound)
    b = jax.random.uniform(kb, (out_features,), dtype,
                           minval=-bound, maxval=bound)
    return w, b


if __name__ == "__main__":
    key = jax.random.PRNGKey(0)
    k_x, k_w1, k_w2 = jax.random.split(key, 3)

    B, S, d_model, d_ff = 2, 8, 32, 64
    x = jax.random.normal(k_x, (B, S, d_model), jnp.float32)
    w1, b1 = _init_linear(k_w1, d_ff, d_model)      # nn.Linear(d_model, d_ff)
    w2, b2 = _init_linear(k_w2, d_model, d_ff)      # nn.Linear(d_ff, d_model)

    params = prepare_ffn_params(w1, b1, w2, b2)     # one-time prep (cast/transpose/pad)

    y_auto = positionwise_feed_forward(x, params)                     # auto -> resident here
    y_res = positionwise_feed_forward(x, params, path="resident")     # exercise fast path
    y_tiled = positionwise_feed_forward(x, params, path="tiled")      # exercise fallback path
    jax.block_until_ready((y_auto, y_res, y_tiled))

    # Reference matching the kernel's precision recipe (bf16 MXU operands,
    # f32 accumulation, f32 bias + ReLU).
    xb = x.reshape(-1, d_model).astype(jnp.bfloat16)
    w1b = w1.T.astype(jnp.bfloat16)
    w2b = w2.T.astype(jnp.bfloat16)
    h_ref = jnp.maximum(
        jnp.dot(xb, w1b, preferred_element_type=jnp.float32) + b1, 0.0)
    ref = (jnp.dot(h_ref.astype(jnp.bfloat16), w2b,
                   preferred_element_type=jnp.float32) + b2)
    ref = ref.reshape(B, S, d_model).astype(x.dtype)

    # Coarse check against full-f32 math (bf16 operand rounding is ~1e-2 rel).
    ref_f32 = jnp.maximum(x @ w1.T + b1, 0.0) @ w2.T + b2

    for name, y in (("auto", y_auto), ("resident", y_res), ("tiled", y_tiled)):
        assert y.shape == (B, S, d_model), f"{name}: bad output shape {y.shape}"
        assert jnp.allclose(y, ref, atol=2e-3, rtol=2e-2), f"{name}: mismatch vs bf16 reference"
        assert jnp.allclose(y, ref_f32, atol=5e-2, rtol=5e-2), f"{name}: mismatch vs f32 reference"

    print("KERNEL_OK")
</pallas_src>

<mosaic_0001>
module attributes {stable_mosaic.version = 11 : i64} {
  func.func @ffn_resident_kernel(%arg0: i32, %arg1: memref<128x128xf32, #tpu.memory_space<vmem>>, %arg2: memref<128x128xbf16, #tpu.memory_space<vmem>>, %arg3: memref<1x128xf32, #tpu.memory_space<vmem>>, %arg4: memref<128x128xbf16, #tpu.memory_space<vmem>>, %arg5: memref<1x128xf32, #tpu.memory_space<vmem>>, %arg6: memref<128x128xf32, #tpu.memory_space<vmem>>) attributes {dimension_semantics = [#tpu.dimension_semantics<parallel>], iteration_bounds = array<i64: 1>, scalar_prefetch = 0 : i64, scratch_operands = 0 : i64, tpu.core_type = #tpu.core_type<tc>, window_params = [{transform_indices = @transform_0, window_bounds = array<i64: 128, 128>}, {pipeline_mode = #tpu.pipeline_mode<synchronous>, transform_indices = @transform_1, window_bounds = array<i64: 128, 128>}, {pipeline_mode = #tpu.pipeline_mode<synchronous>, transform_indices = @transform_2, window_bounds = array<i64: 1, 128>}, {pipeline_mode = #tpu.pipeline_mode<synchronous>, transform_indices = @transform_3, window_bounds = array<i64: 128, 128>}, {pipeline_mode = #tpu.pipeline_mode<synchronous>, transform_indices = @transform_4, window_bounds = array<i64: 1, 128>}, {transform_indices = @transform_5, window_bounds = array<i64: 128, 128>}]} {
    %c0 = arith.constant 0 : index
    %c0_0 = arith.constant 0 : index
    %0 = vector.load %arg1[%c0, %c0_0] : memref<128x128xf32, #tpu.memory_space<vmem>>, vector<128x128xf32>
    %1 = arith.truncf %0 : vector<128x128xf32> to vector<128x128xbf16>
    %c0_1 = arith.constant 0 : index
    %c0_2 = arith.constant 0 : index
    %2 = vector.load %arg2[%c0_1, %c0_2] : memref<128x128xbf16, #tpu.memory_space<vmem>>, vector<128x128xbf16>
    %cst = arith.constant dense<0.000000e+00> : vector<128x128xf32>
    %3 = tpu.matmul %1, %2, %cst {dimension_numbers = #tpu.dot_dimension_numbers<[1], [0], [0], [1], [0, 0, 1, 1], [], []>} : vector<128x128xbf16>, vector<128x128xbf16>, vector<128x128xf32> -> vector<128x128xf32>
    %c0_3 = arith.constant 0 : index
    %c0_4 = arith.constant 0 : index
    %4 = vector.load %arg3[%c0_3, %c0_4] : memref<1x128xf32, #tpu.memory_space<vmem>>, vector<1x128xf32>
    %5 = vector.broadcast %4 : vector<1x128xf32> to vector<128x128xf32>
    %6 = arith.addf %3, %5 : vector<128x128xf32>
    %cst_5 = arith.constant 0.000000e+00 : f32
    %7 = vector.broadcast %cst_5 : f32 to vector<128x128xf32>
    %8 = arith.maximumf %6, %7 : vector<128x128xf32>
    %9 = arith.truncf %8 : vector<128x128xf32> to vector<128x128xbf16>
    %c0_6 = arith.constant 0 : index
    %c0_7 = arith.constant 0 : index
    %10 = vector.load %arg4[%c0_6, %c0_7] : memref<128x128xbf16, #tpu.memory_space<vmem>>, vector<128x128xbf16>
    %cst_8 = arith.constant dense<0.000000e+00> : vector<128x128xf32>
    %11 = tpu.matmul %9, %10, %cst_8 {dimension_numbers = #tpu.dot_dimension_numbers<[1], [0], [0], [1], [0, 0, 1, 1], [], []>} : vector<128x128xbf16>, vector<128x128xbf16>, vector<128x128xf32> -> vector<128x128xf32>
    %c0_9 = arith.constant 0 : index
    %c0_10 = arith.constant 0 : index
    %12 = vector.load %arg5[%c0_9, %c0_10] : memref<1x128xf32, #tpu.memory_space<vmem>>, vector<1x128xf32>
    %13 = vector.broadcast %12 : vector<1x128xf32> to vector<128x128xf32>
    %14 = arith.addf %11, %13 : vector<128x128xf32>
    %c0_11 = arith.constant 0 : index
    %c0_12 = arith.constant 0 : index
    %15 = vector.load %arg6[%c0_11, %c0_12] : memref<128x128xf32, #tpu.memory_space<vmem>>, vector<128x128xf32>
    tpu.vector_store %arg6[%c0_11, %c0_12], %14 {strides = array<i32>} : memref<128x128xf32, #tpu.memory_space<vmem>>, vector<128x128xf32>,
    return
  }
  func.func @transform_0(%arg0: i32) -> (i32, i32) {
    %c0_i32 = arith.constant 0 : i32
    %c0_i32_0 = arith.constant 0 : i32
    return %arg0, %c0_i32 : i32, i32
  }
  func.func @transform_1(%arg0: i32) -> (i32, i32) {
    %c0_i32 = arith.constant 0 : i32
    %c0_i32_0 = arith.constant 0 : i32
    %c0_i32_1 = arith.constant 0 : i32
    return %c0_i32, %c0_i32_0 : i32, i32
  }
  func.func @transform_2(%arg0: i32) -> (i32, i32) {
    %c0_i32 = arith.constant 0 : i32
    %c0_i32_0 = arith.constant 0 : i32
    %c0_i32_1 = arith.constant 0 : i32
    return %c0_i32, %c0_i32_0 : i32, i32
  }
  func.func @transform_3(%arg0: i32) -> (i32, i32) {
    %c0_i32 = arith.constant 0 : i32
    %c0_i32_0 = arith.constant 0 : i32
    %c0_i32_1 = arith.constant 0 : i32
    return %c0_i32, %c0_i32_0 : i32, i32
  }
  func.func @transform_4(%arg0: i32) -> (i32, i32) {
    %c0_i32 = arith.constant 0 : i32
    %c0_i32_0 = arith.constant 0 : i32
    %c0_i32_1 = arith.constant 0 : i32
    return %c0_i32, %c0_i32_0 : i32, i32
  }
  func.func @transform_5(%arg0: i32) -> (i32, i32) {
    %c0_i32 = arith.constant 0 : i32
    %c0_i32_0 = arith.constant 0 : i32
    return %arg0, %c0_i32 : i32, i32
  }
}

</mosaic_0001>

<llo_original>
// kernel: tpu_custom_call.1
$region0: #{tpu_custom_call.1}
  #allocation0 [shape = 'u32[]', space=smem, size = 0x4, offset = 0x4, fixed_abs, tag = 'smem constant byte address 0x4 - core index']
  #allocation1 [shape = 'u32[72,128]{1,0:T(1,128)}', space=vmem, size = 0x9000, scoped, tag = 'internal scratch']
  %s0 = inlined_call_operand.hbm [shape: f32[128,128], index: 0, kind: input, shape index: {}]
  %s1 = inlined_call_operand.hbm [shape: bf16[128,128], index: 1, kind: input, shape index: {}]
  %s2 = inlined_call_operand.vmem [shape: f32[1,128], index: 2, kind: input, shape index: {}]
  %s3 = inlined_call_operand.hbm [shape: bf16[128,128], index: 3, kind: input, shape index: {}]
  %s4 = inlined_call_operand.vmem [shape: f32[1,128], index: 4, kind: input, shape index: {}]
  %s5 = inlined_call_operand.hbm [shape: f32[128,128], index: 5, kind: output, shape index: {}]
  %s6 = sld [smem:[#allocation0]]
  $region42: #{tpu_custom_call.1} parent=0
    _
  %s8 = ssub.s32 1, %s6
  %s9 = scalar_select 0, %s8, %s6
  $region1: #{tpu_custom_call.1} parent=0
    #allocation2 [shape = 'u8[65536]{0}', space=vmem, size = 0x10000, scoped, tag = 'input window, operand 0, single buffered']
    #allocation3 [shape = 's32[1]{0}', space=sflag, size = 0x4, scoped, tag = 'scoped memory for tpu_custom_call.1']
    #allocation4 [shape = 's32[1]{0}', space=sflag, size = 0x4, scoped, tag = 'scoped memory for tpu_custom_call.1']
    #allocation5 [shape = 'u8[32768]{0}', space=vmem, size = 0x8000, scoped, tag = 'input window, operand 1, single buffered']
    #allocation6 [shape = 's32[1]{0}', space=sflag, size = 0x4, scoped, tag = 'scoped memory for tpu_custom_call.1']
    #allocation7 [shape = 'u8[32768]{0}', space=vmem, size = 0x8000, scoped, tag = 'input window, operand 3, single buffered']
    #allocation8 [shape = 'u8[65536]{0}', space=vmem, size = 0x10000, scoped, tag = 'output window, operand 0, single buffered']
    %10 = vsyncpa [#allocation3], 0
    %11 = vsyncpa [#allocation6], 0
    %12 = vsyncpa [#allocation4], 0
    // Predicated region
    $region2: #{tpu_custom_call.1} parent=1 // pred_check
      _
    $region3: #{tpu_custom_call.1} parent=1 // pred_check_branch
      %14 = sbr.rel (0) target = $region5
    $region4: #{tpu_custom_call.1} parent=1 // pred_region
      %16 = vsyncadd [#allocation3], 0
      %s17 = sshll.u32 %s0, 4
      %s18 = int_to_ptr.hbm [resolvable:$true] %s17
      %s19 = sshll.u32 [#allocation2], 4
      %s20 = int_to_ptr.vmem [resolvable:$true] %s19
      %25 = dma.hbm_to_vmem [thread:$0]  %s18, 2048, %s20, [#allocation3], 128, 128, 8
    $region5: #{tpu_custom_call.1} parent=1 // pred_fallthru
      _
    // Predicated region
    $region6: #{tpu_custom_call.1} parent=1 // pred_check
      _
    $region7: #{tpu_custom_call.1} parent=1 // pred_check_branch
      %27 = sbr.rel (0) target = $region9
    $region8: #{tpu_custom_call.1} parent=1 // pred_region
      %29 = vsyncadd [#allocation6], 0
      %s30 = sshll.u32 %s1, 4
      %s31 = int_to_ptr.hbm [resolvable:$true] %s30
      %s32 = sshll.u32 [#allocation5], 4
      %s33 = int_to_ptr.vmem [resolvable:$true] %s32
      %38 = dma.hbm_to_vmem [thread:$0]  %s31, 1024, %s33, [#allocation6], 64, 64, 4
    $region9: #{tpu_custom_call.1} parent=1 // pred_fallthru
      _
    // Predicated region
    $region10: #{tpu_custom_call.1} parent=1 // pred_check
      _
    $region11: #{tpu_custom_call.1} parent=1 // pred_check_branch
      %40 = sbr.rel (0) target = $region13
    $region12: #{tpu_custom_call.1} parent=1 // pred_region
      _
    $region13: #{tpu_custom_call.1} parent=1 // pred_fallthru
      _
    // Predicated region
    $region14: #{tpu_custom_call.1} parent=1 // pred_check
      _
    $region15: #{tpu_custom_call.1} parent=1 // pred_check_branch
      %42 = sbr.rel (0) target = $region17
    $region16: #{tpu_custom_call.1} parent=1 // pred_region
      %44 = vsyncadd [#allocation6], 0
      %s45 = sshll.u32 %s3, 4
      %s46 = int_to_ptr.hbm [resolvable:$true] %s45
      %s47 = sshll.u32 [#allocation7], 4
      %s48 = int_to_ptr.vmem [resolvable:$true] %s47
      %53 = dma.hbm_to_vmem [thread:$0]  %s46, 1024, %s48, [#allocation6], 64, 64, 4
    $region17: #{tpu_custom_call.1} parent=1 // pred_fallthru
      _
    // Predicated region
    $region18: #{tpu_custom_call.1} parent=1 // pred_check
      _
    $region19: #{tpu_custom_call.1} parent=1 // pred_check_branch
      %55 = sbr.rel (0) target = $region21
    $region20: #{tpu_custom_call.1} parent=1 // pred_region
      _
    $region21: #{tpu_custom_call.1} parent=1 // pred_fallthru
      _
    // Predicated region
    $region22: #{tpu_custom_call.1} parent=1 // pred_check
      _
    $region23: #{tpu_custom_call.1} parent=1 // pred_check_branch
      %57 = sbr.rel (0) target = $region25
    $region24: #{tpu_custom_call.1} parent=1 // pred_region
      %59 = dma.done [#allocation3], 2048
    $region25: #{tpu_custom_call.1} parent=1 // pred_fallthru
      _
    // Predicated region
    $region26: #{tpu_custom_call.1} parent=1 // pred_check
      _
    $region27: #{tpu_custom_call.1} parent=1 // pred_check_branch
      %61 = sbr.rel (0) target = $region29
    $region28: #{tpu_custom_call.1} parent=1 // pred_region
      %63 = dma.done [#allocation6], 1024
    $region29: #{tpu_custom_call.1} parent=1 // pred_fallthru
      _
    // Predicated region
    $region30: #{tpu_custom_call.1} parent=1 // pred_check
      _
    $region31: #{tpu_custom_call.1} parent=1 // pred_check_branch
      %65 = sbr.rel (0) target = $region33
    $region32: #{tpu_custom_call.1} parent=1 // pred_region
      %67 = dma.done [#allocation6], 1024
    $region33: #{tpu_custom_call.1} parent=1 // pred_fallthru
      _
    %v68 = vld [vmem:[#allocation2] sm:$0xff]
    %v69 = vld [vmem:[#allocation2 + $0x8] sm:$0xff]
    %v70 = vld [vmem:[#allocation2 + $0x10] sm:$0xff]
    %v71 = vld [vmem:[#allocation2 + $0x18] sm:$0xff]
    %v72 = vld [vmem:[#allocation2 + $0x20] sm:$0xff]
    %v73 = vld [vmem:[#allocation2 + $0x28] sm:$0xff]
    %v74 = vld [vmem:[#allocation2 + $0x30] sm:$0xff]
    %v75 = vld [vmem:[#allocation2 + $0x38] sm:$0xff]
    %v76 = vld [vmem:[#allocation2 + $0x40] sm:$0xff]
    %v77 = vld [vmem:[#allocation2 + $0x48] sm:$0xff]
    %v78 = vld [vmem:[#allocation2 + $0x50] sm:$0xff]
    %v79 = vld [vmem:[#allocation2 + $0x58] sm:$0xff]
    %v80 = vld [vmem:[#allocation2 + $0x60] sm:$0xff]
    %v81 = vld [vmem:[#allocation2 + $0x68] sm:$0xff]
    %v82 = vld [vmem:[#allocation2 + $0x70] sm:$0xff]
    %v83 = vld [vmem:[#allocation2 + $0x78] sm:$0xff]
    %v84 = vpack.c.bf16 %v69, %v68
    %v85 = vpack.c.bf16 %v71, %v70
    %v86 = vpack.c.bf16 %v73, %v72
    %v87 = vpack.c.bf16 %v75, %v74
    %v88 = vpack.c.bf16 %v77, %v76
    %v89 = vpack.c.bf16 %v79, %v78
    %v90 = vpack.c.bf16 %v81, %v80
    %v91 = vpack.c.bf16 %v83, %v82
    %v92 = vld [vmem:[#allocation5] sm:$0xf]
    %v93 = vld [vmem:[#allocation5 + $0x4] sm:$0xf]
    %v94 = vld [vmem:[#allocation5 + $0x8] sm:$0xf]
    %v95 = vld [vmem:[#allocation5 + $0xc] sm:$0xf]
    %v96 = vld [vmem:[#allocation5 + $0x10] sm:$0xf]
    %v97 = vld [vmem:[#allocation5 + $0x14] sm:$0xf]
    %v98 = vld [vmem:[#allocation5 + $0x18] sm:$0xf]
    %v99 = vld [vmem:[#allocation5 + $0x1c] sm:$0xf]
    %v100 = vld [vmem:[#allocation5 + $0x20] sm:$0xf]
    %v101 = vld [vmem:[#allocation5 + $0x24] sm:$0xf]
    %v102 = vld [vmem:[#allocation5 + $0x28] sm:$0xf]
    %v103 = vld [vmem:[#allocation5 + $0x2c] sm:$0xf]
    %v104 = vld [vmem:[#allocation5 + $0x30] sm:$0xf]
    %v105 = vld [vmem:[#allocation5 + $0x34] sm:$0xf]
    %v106 = vld [vmem:[#allocation5 + $0x38] sm:$0xf]
    %v107 = vld [vmem:[#allocation5 + $0x3c] sm:$0xf]
    %v108 = vld [vmem:[%s2] sm:$0x1]
    %v110 = vperm.slane %v108, 0
    %v128 = vunpack.c.l.b16 %v92
    %v129 = vunpack.c.l.b16 %v93
    %v130 = vunpack.c.l.b16 %v94
    %v131 = vunpack.c.l.b16 %v95
    %v132 = vunpack.c.l.b16 %v96
    %v133 = vunpack.c.l.b16 %v97
    %v134 = vunpack.c.l.b16 %v98
    %v135 = vunpack.c.l.b16 %v99
    %v136 = vunpack.c.l.b16 %v100
    %v137 = vunpack.c.l.b16 %v101
    %v138 = vunpack.c.l.b16 %v102
    %v139 = vunpack.c.l.b16 %v103
    %v140 = vunpack.c.l.b16 %v104
    %v141 = vunpack.c.l.b16 %v105
    %v142 = vunpack.c.l.b16 %v106
    %v143 = vunpack.c.l.b16 %v107
    %v144 = vpack.c.b16 %v129, %v128
    %v145 = vpack.c.b16 %v131, %v130
    %v146 = vpack.c.b16 %v133, %v132
    %v147 = vpack.c.b16 %v135, %v134
    %v148 = vpack.c.b16 %v137, %v136
    %v149 = vpack.c.b16 %v139, %v138
    %v150 = vpack.c.b16 %v141, %v140
    %v151 = vpack.c.b16 %v143, %v142
    %160 = vmatpush.bf16.msra.mxu0 %v151
    %161 = vmatpush.bf16.msra.mxu0 %v150
    %162 = vmatpush.bf16.msra.mxu0 %v149
    %163 = vmatpush.bf16.msra.mxu0 %v148
    %164 = vmatpush.bf16.msra.mxu0 %v147
    %165 = vmatpush.bf16.msra.mxu0 %v146
    %166 = vmatpush.bf16.msra.mxu0 %v145
    %167 = vmatpush.bf16.msra.mxu0 %v144
    %168 = vmatmul.bf16.gmra.mxu0 %v84
    %v169 = vpop.f32.mrf.mxu0
    %v170 = vadd.f32 %v110, %v169
    %v171 = vpop.f32.mrf.mxu0
    %v172 = vadd.f32 %v110, %v171
    %173 = vmatmul.bf16.gmra.mxu0 %v85
    %v174 = vpop.f32.mrf.mxu0
    %v175 = vadd.f32 %v110, %v174
    %v176 = vpop.f32.mrf.mxu0
    %v177 = vadd.f32 %v110, %v176
    %178 = vmatmul.bf16.gmra.mxu0 %v86
    %v179 = vpop.f32.mrf.mxu0
    %v180 = vadd.f32 %v110, %v179
    %v181 = vpop.f32.mrf.mxu0
    %v182 = vadd.f32 %v110, %v181
    %183 = vmatmul.bf16.gmra.mxu0 %v87
    %v184 = vpop.f32.mrf.mxu0
    %v185 = vadd.f32 %v110, %v184
    %v186 = vpop.f32.mrf.mxu0
    %v187 = vadd.f32 %v110, %v186
    %188 = vmatmul.bf16.gmra.mxu0 %v88
    %v189 = vpop.f32.mrf.mxu0
    %v190 = vadd.f32 %v110, %v189
    %v191 = vpop.f32.mrf.mxu0
    %v192 = vadd.f32 %v110, %v191
    %193 = vmatmul.bf16.gmra.mxu0 %v89
    %v194 = vpop.f32.mrf.mxu0
    %v195 = vadd.f32 %v110, %v194
    %v196 = vpop.f32.mrf.mxu0
    %v197 = vadd.f32 %v110, %v196
    %198 = vmatmul.bf16.gmra.mxu0 %v90
    %v199 = vpop.f32.mrf.mxu0
    %v200 = vadd.f32 %v110, %v199
    %v201 = vpop.f32.mrf.mxu0
    %v202 = vadd.f32 %v110, %v201
    %203 = vmatmul.bf16.gmra.mxu0 %v91
    %v204 = vpop.f32.mrf.mxu0
    %v205 = vadd.f32 %v110, %v204
    %v206 = vpop.f32.mrf.mxu0
    %v207 = vadd.f32 %v110, %v206
    %208 = vdwg.mxu0
    %v209 = vmax.f32 %v170, 0.0
    %v210 = vmax.f32 %v172, 0.0
    %v211 = vmax.f32 %v175, 0.0
    %v212 = vmax.f32 %v177, 0.0
    %v213 = vmax.f32 %v180, 0.0
    %v214 = vmax.f32 %v182, 0.0
    %v215 = vmax.f32 %v185, 0.0
    %v216 = vmax.f32 %v187, 0.0
    %v217 = vmax.f32 %v190, 0.0
    %v218 = vmax.f32 %v192, 0.0
    %v219 = vmax.f32 %v195, 0.0
    %v220 = vmax.f32 %v197, 0.0
    %v221 = vmax.f32 %v200, 0.0
    %v222 = vmax.f32 %v202, 0.0
    %v223 = vmax.f32 %v205, 0.0
    %v224 = vmax.f32 %v207, 0.0
    %v225 = vpack.c.bf16 %v210, %v209
    %v226 = vpack.c.bf16 %v212, %v211
    %v227 = vpack.c.bf16 %v214, %v213
    %v228 = vpack.c.bf16 %v216, %v215
    %v229 = vpack.c.bf16 %v218, %v217
    %v230 = vpack.c.bf16 %v220, %v219
    %v231 = vpack.c.bf16 %v222, %v221
    %v232 = vpack.c.bf16 %v224, %v223
    %v233 = vld [vmem:[#allocation7] sm:$0xf]
    %v234 = vld [vmem:[#allocation7 + $0x4] sm:$0xf]
    %v235 = vld [vmem:[#allocation7 + $0x8] sm:$0xf]
    %v236 = vld [vmem:[#allocation7 + $0xc] sm:$0xf]
    %v237 = vld [vmem:[#allocation7 + $0x10] sm:$0xf]
    %v238 = vld [vmem:[#allocation7 + $0x14] sm:$0xf]
    %v239 = vld [vmem:[#allocation7 + $0x18] sm:$0xf]
    %v240 = vld [vmem:[#allocation7 + $0x1c] sm:$0xf]
    %v241 = vld [vmem:[#allocation7 + $0x20] sm:$0xf]
    %v242 = vld [vmem:[#allocation7 + $0x24] sm:$0xf]
    %v243 = vld [vmem:[#allocation7 + $0x28] sm:$0xf]
    %v244 = vld [vmem:[#allocation7 + $0x2c] sm:$0xf]
    %v245 = vld [vmem:[#allocation7 + $0x30] sm:$0xf]
    %v246 = vld [vmem:[#allocation7 + $0x34] sm:$0xf]
    %v247 = vld [vmem:[#allocation7 + $0x38] sm:$0xf]
    %v248 = vld [vmem:[#allocation7 + $0x3c] sm:$0xf]
    %v249 = vld [vmem:[%s4] sm:$0x1]
    %v251 = vperm.slane %v249, 0
    %v269 = vunpack.c.l.b16 %v233
    %v270 = vunpack.c.l.b16 %v234
    %v271 = vunpack.c.l.b16 %v235
    %v272 = vunpack.c.l.b16 %v236
    %v273 = vunpack.c.l.b16 %v237
    %v274 = vunpack.c.l.b16 %v238
    %v275 = vunpack.c.l.b16 %v239
    %v276 = vunpack.c.l.b16 %v240
    %v277 = vunpack.c.l.b16 %v241
    %v278 = vunpack.c.l.b16 %v242
    %v279 = vunpack.c.l.b16 %v243
    %v280 = vunpack.c.l.b16 %v244
    %v281 = vunpack.c.l.b16 %v245
    %v282 = vunpack.c.l.b16 %v246
    %v283 = vunpack.c.l.b16 %v247
    %v284 = vunpack.c.l.b16 %v248
    %v285 = vpack.c.b16 %v270, %v269
    %v286 = vpack.c.b16 %v272, %v271
    %v287 = vpack.c.b16 %v274, %v273
    %v288 = vpack.c.b16 %v276, %v275
    %v289 = vpack.c.b16 %v278, %v277
    %v290 = vpack.c.b16 %v280, %v279
    %v291 = vpack.c.b16 %v282, %v281
    %v292 = vpack.c.b16 %v284, %v283
    %301 = vmatpush.bf16.msra.mxu0 %v292
    %302 = vmatpush.bf16.msra.mxu0 %v291
    %303 = vmatpush.bf16.msra.mxu0 %v290
    %304 = vmatpush.bf16.msra.mxu0 %v289
    %305 = vmatpush.bf16.msra.mxu0 %v288
    %306 = vmatpush.bf16.msra.mxu0 %v287
    %307 = vmatpush.bf16.msra.mxu0 %v286
    %308 = vmatpush.bf16.msra.mxu0 %v285
    %309 = vmatmul.bf16.gmra.mxu0 %v225
    %v310 = vpop.f32.mrf.mxu0
    %v311 = vadd.f32 %v251, %v310
    %v312 = vpop.f32.mrf.mxu0
    %v313 = vadd.f32 %v251, %v312
    %314 = vmatmul.bf16.gmra.mxu0 %v226
    %v315 = vpop.f32.mrf.mxu0
    %v316 = vadd.f32 %v251, %v315
    %v317 = vpop.f32.mrf.mxu0
    %v318 = vadd.f32 %v251, %v317
    %319 = vmatmul.bf16.gmra.mxu0 %v227
    %v320 = vpop.f32.mrf.mxu0
    %v321 = vadd.f32 %v251, %v320
    %v322 = vpop.f32.mrf.mxu0
    %v323 = vadd.f32 %v251, %v322
    %324 = vmatmul.bf16.gmra.mxu0 %v228
    %v325 = vpop.f32.mrf.mxu0
    %v326 = vadd.f32 %v251, %v325
    %v327 = vpop.f32.mrf.mxu0
    %v328 = vadd.f32 %v251, %v327
    %329 = vmatmul.bf16.gmra.mxu0 %v229
    %v330 = vpop.f32.mrf.mxu0
    %v331 = vadd.f32 %v251, %v330
    %v332 = vpop.f32.mrf.mxu0
    %v333 = vadd.f32 %v251, %v332
    %334 = vmatmul.bf16.gmra.mxu0 %v230
    %v335 = vpop.f32.mrf.mxu0
    %v336 = vadd.f32 %v251, %v335
    %v337 = vpop.f32.mrf.mxu0
    %v338 = vadd.f32 %v251, %v337
    %339 = vmatmul.bf16.gmra.mxu0 %v231
    %v340 = vpop.f32.mrf.mxu0
    %v341 = vadd.f32 %v251, %v340
    %v342 = vpop.f32.mrf.mxu0
    %v343 = vadd.f32 %v251, %v342
    %344 = vmatmul.bf16.gmra.mxu0 %v232
    %v345 = vpop.f32.mrf.mxu0
    %v346 = vadd.f32 %v251, %v345
    %v347 = vpop.f32.mrf.mxu0
    %v348 = vadd.f32 %v251, %v347
    %349 = vdwg.mxu0
    %350 = vst [vmem:[#allocation8] sm:$0xff] %v311
    %351 = vst [vmem:[#allocation8 + $0x8] sm:$0xff] %v313
    %352 = vst [vmem:[#allocation8 + $0x10] sm:$0xff] %v316
    %353 = vst [vmem:[#allocation8 + $0x18] sm:$0xff] %v318
    %354 = vst [vmem:[#allocation8 + $0x20] sm:$0xff] %v321
    %355 = vst [vmem:[#allocation8 + $0x28] sm:$0xff] %v323
    %356 = vst [vmem:[#allocation8 + $0x30] sm:$0xff] %v326
    %357 = vst [vmem:[#allocation8 + $0x38] sm:$0xff] %v328
    %358 = vst [vmem:[#allocation8 + $0x40] sm:$0xff] %v331
    %359 = vst [vmem:[#allocation8 + $0x48] sm:$0xff] %v333
    %360 = vst [vmem:[#allocation8 + $0x50] sm:$0xff] %v336
    %361 = vst [vmem:[#allocation8 + $0x58] sm:$0xff] %v338
    %362 = vst [vmem:[#allocation8 + $0x60] sm:$0xff] %v341
    %363 = vst [vmem:[#allocation8 + $0x68] sm:$0xff] %v343
    %364 = vst [vmem:[#allocation8 + $0x70] sm:$0xff] %v346
    %365 = vst [vmem:[#allocation8 + $0x78] sm:$0xff] %v348
    // Predicated region
    $region34: #{tpu_custom_call.1} parent=1 // pred_check
      _
    $region35: #{tpu_custom_call.1} parent=1 // pred_check_branch
      %367 = sbr.rel (0) target = $region37
    $region36: #{tpu_custom_call.1} parent=1 // pred_region
      %369 = vsyncadd [#allocation4], 0
      %s370 = sshll.u32 [#allocation8], 4
      %s371 = int_to_ptr.vmem [resolvable:$true] %s370
      %s372 = sshll.u32 %s5, 4
      %s373 = int_to_ptr.hbm [resolvable:$true] %s372
      %378 = dma.vmem_to_hbm [thread:$0]  %s371, 2048, %s373, [#allocation4], 128, 128, 8
    $region37: #{tpu_custom_call.1} parent=1 // pred_fallthru
      _
    // Predicated region
    $region38: #{tpu_custom_call.1} parent=1 // pred_check
      _
    $region39: #{tpu_custom_call.1} parent=1 // pred_check_branch
      %380 = sbr.rel (0) target = $region41
    $region40: #{tpu_custom_call.1} parent=1 // pred_region
      %382 = dma.done [#allocation4], 2048
    $region41: #{tpu_custom_call.1} parent=1 // pred_fallthru
      _
    %383 = vsyncpa [#allocation3], 1
    %384 = vsyncpa [#allocation6], 1
    %385 = vsyncpa [#allocation4], 1

</llo_original>
